<compile_context>
chip_gen: v7x
topology: tpu7x:2x2x1
jax: 0.10.0
libtpu: 0.0.40
codegen_flags: <defaults>
</compile_context>

<pallas_src>
import functools
import math

import jax
import jax.numpy as jnp
from jax.experimental import pallas as pl
from jax.experimental.pallas import tpu as pltpu


# ---------------------------------------------------------------------------
# Kernels
# ---------------------------------------------------------------------------

def _copy_kernel(x_ref, o_ref):
    # Pure copy: the transpose is expressed entirely through the BlockSpec
    # index maps (DMA addressing).  Zero in-kernel compute, lane-dense stores.
    o_ref[...] = x_ref[...]


def _minor_swap_kernel(x_ref, o_ref):
    # Block: x (1, R, S) -> out (1, S, R).  Single 2-D (minormost) transpose.
    o_ref[0] = jnp.swapaxes(x_ref[0], 0, 1)


def _einshape_kernel(x_ref, o_ref, *, eq):
    # General fallback: whole-array relayout inside VMEM.
    o_ref[...] = pltpu.einshape(eq, x_ref[...])


def _parallel(n):
    return pltpu.CompilerParams(dimension_semantics=("parallel",) * n)


# ---------------------------------------------------------------------------
# Wrapper
# ---------------------------------------------------------------------------

@functools.partial(jax.jit, static_argnames=("dim1", "dim2"))
def trans_forward(x, dim1, dim2):
    """Pallas-TPU equivalent of torch.Tensor.transpose(dim1, dim2)."""
    nd = x.ndim
    if nd < 2:
        raise ValueError("transpose needs at least 2 dimensions")
    d1 = dim1 % nd
    d2 = dim2 % nd
    if d1 == d2:
        return x
    d1, d2 = min(d1, d2), max(d1, d2)

    shape = x.shape
    perm = list(range(nd))
    perm[d1], perm[d2] = perm[d2], perm[d1]
    perm = tuple(perm)
    out_shape = tuple(shape[p] for p in perm)

    # ---- Path 1: swap of the two minormost dims -> in-register 2-D transpose
    if d1 == nd - 2 and d2 == nd - 1:
        L = math.prod(shape[:-2])
        R, S = shape[-2], shape[-1]
        x3 = x.reshape(L, R, S)                              # free reshape
        o3 = pl.pallas_call(
            _minor_swap_kernel,
            out_shape=jax.ShapeDtypeStruct((L, S, R), x.dtype),
            grid_spec=pltpu.PrefetchScalarGridSpec(
                num_scalar_prefetch=0,
                grid=(L,),
                in_specs=[pl.BlockSpec((1, R, S), lambda l: (l, 0, 0))],
                out_specs=pl.BlockSpec((1, S, R), lambda l: (l, 0, 0)),
            ),
            compiler_params=_parallel(1),
        )(x3)
        return o3.reshape(out_shape)                         # free reshape

    # ---- Path 2: neither swapped dim is the minormost -> pure-DMA copy,
    #      transpose expressed purely via BlockSpec index maps.
    if d2 < nd - 1:
        P = math.prod(shape[:d1])            # dims before d1
        A = shape[d1]                        # first swapped dim
        M = math.prod(shape[d1 + 1:d2])      # dims between the swapped pair
        B = shape[d2]                        # second swapped dim
        T = math.prod(shape[d2 + 1:])        # trailing dims (incl. lane axis)
        if T % 128 == 0 or M * A == 1:
            x3 = x.reshape(P * A * M, B, T)                  # free reshape
            o3 = pl.pallas_call(
                _copy_kernel,
                out_shape=jax.ShapeDtypeStruct((P, B, M * A * T), x.dtype),
                grid_spec=pltpu.PrefetchScalarGridSpec(
                    num_scalar_prefetch=0,
                    grid=(P, A, M),
                    in_specs=[pl.BlockSpec(
                        (1, B, T),
                        lambda p, a, m: (p * A * M + a * M + m, 0, 0))],
                    out_specs=pl.BlockSpec(
                        (1, B, T),
                        lambda p, a, m: (p, 0, m * A + a)),
                ),
                compiler_params=_parallel(3),
            )(x3)
            return o3.reshape(out_shape)                     # free reshape

    # ---- Path 3: general fallback (swap involves the lane dim non-adjacently,
    #      or trailing extent is not lane-aligned): whole-array relayout.
    # TODO(synk): tile this fallback for arrays that do not fit in VMEM.
    letters = "abcdefghijklmnopqrstuvwxyz"[:nd]
    eq = letters + "->" + "".join(letters[p] for p in perm)
    return pl.pallas_call(
        functools.partial(_einshape_kernel, eq=eq),
        out_shape=jax.ShapeDtypeStruct(out_shape, x.dtype),
        grid_spec=pltpu.PrefetchScalarGridSpec(
            num_scalar_prefetch=0,
            grid=(1,),
            in_specs=[pl.BlockSpec(shape, lambda i: (0,) * nd)],
            out_specs=pl.BlockSpec(out_shape, lambda i: (0,) * nd),
        ),
    )(x)


class Trans:
    """Mirror of the PyTorch `trans` module."""

    def __init__(self, dim1, dim2):
        self.dim1 = dim1
        self.dim2 = dim2

    def __call__(self, x):
        return trans_forward(x, self.dim1, self.dim2)


# ---------------------------------------------------------------------------
# Demo / self-check
# ---------------------------------------------------------------------------

if __name__ == "__main__":
    key = jax.random.PRNGKey(0)
    # Small 4-D activation (batch=2, channels=4, h=16, w=128).  The last dim
    # is lane-aligned (128) so the pure-DMA path uses unmasked, lane-dense
    # stores.
    x = jax.random.normal(key, (2, 4, 16, 128), jnp.float32)

    cases = [(1, 2), (2, 3), (0, 1)]
    for d1, d2 in cases:
        mod = Trans(d1, d2)
        out = jax.block_until_ready(mod(x))
        ref = jnp.swapaxes(x, d1, d2)
        assert out.shape == ref.shape, (d1, d2, out.shape, ref.shape)
        assert bool(jnp.all(out == ref)), f"mismatch for transpose({d1},{d2})"

    print("KERNEL_OK")
</pallas_src>

<mosaic_0001>
module attributes {stable_mosaic.version = 11 : i64} {
  func.func @_copy_kernel(%arg0: i32, %arg1: i32, %arg2: i32, %arg3: memref<1x16x128xf32, #tpu.memory_space<vmem>>, %arg4: memref<1x16x128xf32, #tpu.memory_space<vmem>>) attributes {dimension_semantics = [#tpu.dimension_semantics<parallel>, #tpu.dimension_semantics<parallel>, #tpu.dimension_semantics<parallel>], iteration_bounds = array<i64: 2, 4, 1>, scalar_prefetch = 0 : i64, scratch_operands = 0 : i64, tpu.core_type = #tpu.core_type<tc>, window_params = [{transform_indices = @transform_0, window_bounds = array<i64: 1, 16, 128>}, {transform_indices = @transform_1, window_bounds = array<i64: 1, 16, 128>}]} {
    %c0 = arith.constant 0 : index
    %c0_0 = arith.constant 0 : index
    %c0_1 = arith.constant 0 : index
    %0 = vector.load %arg3[%c0, %c0_0, %c0_1] : memref<1x16x128xf32, #tpu.memory_space<vmem>>, vector<1x16x128xf32>
    %c0_2 = arith.constant 0 : index
    %c0_3 = arith.constant 0 : index
    %c0_4 = arith.constant 0 : index
    %1 = vector.load %arg4[%c0_2, %c0_3, %c0_4] : memref<1x16x128xf32, #tpu.memory_space<vmem>>, vector<1x16x128xf32>
    tpu.vector_store %arg4[%c0_2, %c0_3, %c0_4], %0 {strides = array<i32>} : memref<1x16x128xf32, #tpu.memory_space<vmem>>, vector<1x16x128xf32>,
    return
  }
  func.func @transform_0(%arg0: i32, %arg1: i32, %arg2: i32) -> (i32, i32, i32) {
    %c4_i32 = arith.constant 4 : i32
    %0 = arith.muli %arg0, %c4_i32 : i32
    %c1_i32 = arith.constant 1 : i32
    %1 = arith.muli %0, %c1_i32 : i32
    %c1_i32_0 = arith.constant 1 : i32
    %2 = arith.muli %arg1, %c1_i32_0 : i32
    %3 = arith.addi %1, %2 : i32
    %4 = arith.addi %3, %arg2 : i32
    %c0_i32 = arith.constant 0 : i32
    %c0_i32_1 = arith.constant 0 : i32
    %c0_i32_2 = arith.constant 0 : i32
    return %4, %c0_i32, %c0_i32_1 : i32, i32, i32
  }
  func.func @transform_1(%arg0: i32, %arg1: i32, %arg2: i32) -> (i32, i32, i32) {
    %c4_i32 = arith.constant 4 : i32
    %0 = arith.muli %arg2, %c4_i32 : i32
    %1 = arith.addi %0, %arg1 : i32
    %c0_i32 = arith.constant 0 : i32
    %c0_i32_0 = arith.constant 0 : i32
    return %arg0, %c0_i32, %1 : i32, i32, i32
  }
}

</mosaic_0001>

<llo_original>
// kernel: trans_forward.1
$region0: #{trans_forward.1}
  #allocation0 [shape = 'u32[]', space=smem, size = 0x4, offset = 0x4, fixed_abs, tag = 'smem constant byte address 0x4 - core index']
  #allocation1 [shape = 'u32[144,128]{1,0:T(1,128)}', space=vmem, size = 0x12000, scoped, tag = 'internal scratch']
  %s0 = inlined_call_operand.hbm [shape: f32[8,16,128], index: 0, kind: input, shape index: {}]
  %s1 = inlined_call_operand.vmem [shape: f32[2,16,512], index: 1, kind: output, shape index: {}]
  %s2 = sld [smem:[#allocation0]]
  $region75: #{trans_forward.1} parent=0
    _
  %s4 = ssub.s32 1, %s2
  %s5 = scalar_select 0, %s4, %s2
  $region1: #{trans_forward.1} parent=0
    #allocation2 [shape = 'u8[16384]{0}', space=vmem, size = 0x4000, scoped, tag = 'input window, operand 0']
    #allocation3 [shape = 's32[2]{0}', space=sflag, size = 0x8, scoped, tag = 'scoped memory for trans_forward.1']
    #allocation4 [shape = 'u8[16384]{0}', space=vmem, size = 0x4000, scoped, tag = 'output window, operand 0']
    %6 = vsyncpa [#allocation3], 0
    %s7 = scalar_lea.sflag [#allocation3], 1
    %8 = vsyncpa %s7, 0
    loop: start=0, step=1, limit=10
    $region2: #{trans_forward.1} parent=1 // loop_pre_header
      _
    $region3: #{trans_forward.1} parent=1 // loop_header
      %s10 = sphi 0, %s14
      %p11 = scmp.ge.s32.totalorder %s10, 10
      %s17 = sphi 0, %s36
      %s18 = sphi 0, %s32
      %s19 = sphi 0, %s28
      %s20 = sphi 0, %s17
      %s21 = sphi 0, %s18
      %s22 = sphi 0, %s19
      %s23 = sphi 0, %s20
      %s24 = sphi 0, %s21
      %s25 = sphi 0, %s22
      %s45 = sphi 0, %s47
      %s48 = sphi 0, %s45
      %s49 = sphi 0, %s48
      %s65 = sphi 0, %s49
      %s77 = sphi 0, %s79
      %s80 = sphi 0, %s77
      %s81 = sphi 0, %s80
      %s97 = sphi 0, %s81
    $region4: #{trans_forward.1} parent=1 // loop_header_branch
      %13 = sbr.rel (%p11) target = $region8
    $region5: #{trans_forward.1} parent=1 // loop_body
      %s15 = ssub.s32 %s10, 1
      %s16 = ssub.s32 %s10, 2
      %s26 = sadd.s32 1, %s19
      %p27 = scmp.ge.s32.totalorder %s26, 1
      %s28 = scalar_select %p27, 0, %s26
      %s29 = sadd.s32 1, %s18
      %s30 = scalar_select %p27, %s29, %s18
      %p31 = scmp.ge.s32.totalorder %s30, 4
      %s32 = scalar_select %p31, 0, %s30
      %s33 = sadd.s32 1, %s17
      %s34 = scalar_select %p31, %s33, %s17
      %p35 = scmp.ge.s32.totalorder %s34, 2
      %s36 = scalar_select %p35, 0, %s34
      %s37 = smul.u32 %s17, 4
      %s38 = sadd.s32 %s37, %s18
      %s39 = sadd.s32 %s38, %s19
      %s40 = smul.u32 %s36, 4
      %s41 = sadd.s32 %s40, %s32
      %s42 = sadd.s32 %s41, %s28
      %s43 = ssub.s32 %s39, %s42
      %p44 = scmp.eq.s32.totalorder %s43, 0
      %s46 = sadd.s32 %s45, 1
      %s47 = scalar_select %p44, %s45, %s46
      %p50 = pneg %p44
      %p51 = scmp.eq.s32.totalorder %s10, 7
      %p52 = por %p50, %p51
      %p53 = scmp.ne.s32.totalorder %s45, %s48
      %p54 = scmp.eq.s32.totalorder %s10, 0
      %p55 = por %p53, %p54
      %p56 = scmp.ne.s32.totalorder %s45, %s48
      %p57 = scmp.eq.s32.totalorder %s15, 7
      %p58 = por %p56, %p57
      %p59 = scmp.ne.s32.totalorder %s48, %s49
      %p60 = scmp.eq.s32.totalorder %s15, 0
      %p61 = por %p59, %p60
      %p62 = scmp.ne.s32.totalorder %s48, %s49
      %p63 = scmp.eq.s32.totalorder %s16, 7
      %p64 = por %p62, %p63
      %p66 = scmp.ne.s32.totalorder %s49, %s65
      %p67 = scmp.eq.s32.totalorder %s16, 0
      %p68 = por %p66, %p67
      %s69 = smul.u32 %s19, 4
      %s70 = sadd.s32 %s69, %s18
      %s71 = smul.u32 %s28, 4
      %s72 = sadd.s32 %s71, %s32
      %s73 = ssub.s32 %s17, %s36
      %s74 = ssub.s32 %s70, %s72
      %s75 = sor.u32 %s73, %s74
      %p76 = scmp.eq.s32.totalorder %s75, 0
      %s78 = sadd.s32 %s77, 1
      %s79 = scalar_select %p76, %s77, %s78
      %p82 = pneg %p76
      %p83 = scmp.eq.s32.totalorder %s10, 7
      %p84 = por %p82, %p83
      %p85 = scmp.ne.s32.totalorder %s77, %s80
      %p86 = scmp.eq.s32.totalorder %s10, 0
      %p87 = por %p85, %p86
      %p88 = scmp.ne.s32.totalorder %s77, %s80
      %p89 = scmp.eq.s32.totalorder %s15, 7
      %p90 = por %p88, %p89
      %p91 = scmp.ne.s32.totalorder %s80, %s81
      %p92 = scmp.eq.s32.totalorder %s15, 0
      %p93 = por %p91, %p92
      %p94 = scmp.ne.s32.totalorder %s80, %s81
      %p95 = scmp.eq.s32.totalorder %s16, 7
      %p96 = por %p94, %p95
      %p98 = scmp.ne.s32.totalorder %s81, %s97
      %p99 = scmp.eq.s32.totalorder %s16, 0
      %p100 = por %p98, %p99
      %p101 = scmp.le.s32.totalorder 1, %s10
      %p102 = scmp.lt.s32.totalorder %s10, 9
      %p103 = pnand %p101, %p102
      %p104 = pneg %p103
      // Predicated region
      $region9: #{trans_forward.1} parent=5 // pred_check
        _
      $region10: #{trans_forward.1} parent=5 // pred_check_branch
        %106 = sbr.rel (%p103) target = $region12
      $region11: #{trans_forward.1} parent=5 // pred_region
        %s107 = ssub.s32 %s10, 1
      $region12: #{trans_forward.1} parent=5 // pred_fallthru
        _
      %p108 = scmp.lt.s32.totalorder %s10, 8
      // Predicated region
      $region13: #{trans_forward.1} parent=5 // pred_check
        %p109 = pneg %p108
      $region14: #{trans_forward.1} parent=5 // pred_check_branch
        %111 = sbr.rel (%p109) target = $region16
      $region15: #{trans_forward.1} parent=5 // pred_region
        // Predicated region
        $region17: #{trans_forward.1} parent=15 // pred_check
          %p112 = pneg %p55
        $region18: #{trans_forward.1} parent=15 // pred_check_branch
          %114 = sbr.rel (%p112) target = $region20
        $region19: #{trans_forward.1} parent=15 // pred_region
          %s115 = sand.u32 %s45, 1
          %s116 = scalar_lea.sflag [#allocation3], %s115
          %s117 = sand.u32 %s45, 1
          %s118 = smul.addr %s117, 16
          %s119 = scalar_lea.vmem [#allocation2], %s118
          %s120 = smul.u32 %s17, 4
          %s121 = sadd.s32 %s120, %s18
          %s122 = sadd.s32 %s121, %s19
          %s124 = ssub.s32 256, 256
          %125 = vsyncadd %s116, %s124
          %s126 = smul.addr %s122, 2
          %s127 = smul.addr %s126, 128
          %s128 = scalar_lea.hbm %s0, %s127
          %s129 = sshll.u32 %s119, 4
          %s130 = int_to_ptr.vmem [resolvable:$true] %s129
          %135 = dma.hbm_to_vmem [thread:$0]  %s128, 256, %s130, %s116, 128, 128, 8
        $region20: #{trans_forward.1} parent=15 // pred_fallthru
          _
      $region16: #{trans_forward.1} parent=5 // pred_fallthru
        _
      %p136 = scmp.le.s32.totalorder 1, %s10
      %p137 = scmp.lt.s32.totalorder %s10, 9
      %p138 = pnand %p136, %p137
      %p139 = pneg %p138
      // Predicated region
      $region21: #{trans_forward.1} parent=5 // pred_check
        _
      $region22: #{trans_forward.1} parent=5 // pred_check_branch
        %141 = sbr.rel (%p138) target = $region24
      $region23: #{trans_forward.1} parent=5 // pred_region
        %s142 = ssub.s32 %s10, 1
        %s143 = sand.u32 %s48, 1
        %s144 = scalar_lea.sflag [#allocation3], %s143
        %s145 = sand.u32 %s48, 1
        %s146 = smul.addr %s145, 16
        %s147 = scalar_lea.vmem [#allocation2], %s146
        // Predicated region
        $region25: #{trans_forward.1} parent=23 // pred_check
          %p148 = pneg %p61
        $region26: #{trans_forward.1} parent=23 // pred_check_branch
          %150 = sbr.rel (%p148) target = $region28
        $region27: #{trans_forward.1} parent=23 // pred_region
          %151 = dma.done %s144, 256
        $region28: #{trans_forward.1} parent=23 // pred_fallthru
          _
        %s152 = sand.u32 %s48, 1
        %s153 = scalar_lea.sflag [#allocation3], %s152
        %s154 = sand.u32 %s48, 1
        %s155 = smul.addr %s154, 16
        %s156 = scalar_lea.vmem [#allocation2], %s155
        %p157 = pneg %p61
        %p158 = pneg %p58
        %p159 = pneg %p93
        %p160 = pneg %p90
        %s161 = sand.u32 %s80, 1
        %s162 = sand.u32 %s80, 1
        %s163 = smul.addr %s162, 16
        %s164 = scalar_lea.vmem [#allocation4], %s163
        %s165 = smul.u32 %s20, 4
        %s166 = sadd.s32 %s165, %s21
        %s167 = sadd.s32 %s166, %s22
        %s168 = smul.u32 %s22, 4
        %s169 = sadd.s32 %s168, %s21
        %v170 = vld [vmem:[%s147] sm:$0xff]
        %v171 = vld [vmem:[%s147 + $0x8] sm:$0xff]
        %172 = vst [vmem:[%s164] sm:$0xff] %v170
        %173 = vst [vmem:[%s164 + $0x8] sm:$0xff] %v171
        %s174 = sand.u32 %s80, 1
        %s175 = sand.u32 %s80, 1
        %s176 = smul.addr %s175, 16
        %s177 = scalar_lea.vmem [#allocation4], %s176
        // Predicated region
        $region29: #{trans_forward.1} parent=23 // pred_check
          %p178 = pneg %p90
        $region30: #{trans_forward.1} parent=23 // pred_check_branch
          %180 = sbr.rel (%p178) target = $region32
        $region31: #{trans_forward.1} parent=23 // pred_region
          %s181 = smul.u32 %s22, 4
          %s182 = sadd.s32 %s181, %s21
          %s183 = smul.addr %s20, 8
          %s184 = sadd.s32 %s182, %s183
          %s185 = smul.addr %s184, 8
          %s186 = scalar_lea.vmem %s1, %s185
          // Predicated region
          $region33: #{trans_forward.1} parent=31 // pred_check
            _
          $region34: #{trans_forward.1} parent=31 // pred_check_branch
            %188 = sbr.rel (0) target = $region36
          $region35: #{trans_forward.1} parent=31 // pred_region
            // Predicated region
            $region37: #{trans_forward.1} parent=35 // pred_check
              _
            $region38: #{trans_forward.1} parent=35 // pred_check_branch
              %190 = sbr.rel (0) target = $region40
            $region39: #{trans_forward.1} parent=35 // pred_region
              // Predicated region
              $region52: #{trans_forward.1} parent=39 // pred_check
                _
              $region53: #{trans_forward.1} parent=39 // pred_check_branch
                %207 = sbr.rel (0) target = $region55
              $region54: #{trans_forward.1} parent=39 // pred_region
                loop: start=0, step=1, limit=1
                $region56: #{trans_forward.1} parent=54 // loop_pre_header
                  _
                $region57: #{trans_forward.1} parent=54 // loop_header
                  %s209 = sphi 0, %s213
                  %p210 = scmp.ge.s32.totalorder %s209, 1
                  %s214 = sphi %s177, %s177
                  %s215 = sphi %s186, %s186
                $region58: #{trans_forward.1} parent=54 // loop_header_branch
                  %212 = sbr.rel (%p210) target = $region62
                $region59: #{trans_forward.1} parent=54 // loop_body
                  %v216 = vld [vmem:[%s214] sm:$0xff]
                  %217 = vst [vmem:[%s215] sm:$0xff] %v216
                  %v218 = vld [vmem:[%s214 + $0x8] sm:$0xff]
                  %219 = vst [vmem:[%s215 + $0x20] sm:$0xff] %v218
                $region60: #{trans_forward.1} parent=54 // loop_footer
                  %s213 = sadd.s32 1, %s209
                $region61: #{trans_forward.1} parent=54 // loop_footer_branch
                  %208 = sbr.rel target = $region57
                $region62: #{trans_forward.1} parent=54 // loop_exit
                  _
              $region55: #{trans_forward.1} parent=39 // pred_fallthru
                _
              // Predicated region
              $region63: #{trans_forward.1} parent=39 // pred_check
                _
              $region64: #{trans_forward.1} parent=39 // pred_check_branch
                %221 = sbr.rel target = $region66
              $region65: #{trans_forward.1} parent=39 // pred_region
                _
              $region66: #{trans_forward.1} parent=39 // pred_fallthru
                _
            $region40: #{trans_forward.1} parent=35 // pred_fallthru
              _
            // Predicated region
            $region41: #{trans_forward.1} parent=35 // pred_check
              _
            $region42: #{trans_forward.1} parent=35 // pred_check_branch
              %192 = sbr.rel target = $region44
            $region43: #{trans_forward.1} parent=35 // pred_region
              loop: start=0, step=1, limit=1
              $region45: #{trans_forward.1} parent=43 // loop_pre_header
                _
              $region46: #{trans_forward.1} parent=43 // loop_header
                %s195 = sphi 0, %s199
                %p196 = scmp.ge.s32.totalorder %s195, 1
                %s200 = sphi %s177, %s177
                %s201 = sphi %s186, %s186
              $region47: #{trans_forward.1} parent=43 // loop_header_branch
                %198 = sbr.rel (%p196) target = $region51
              $region48: #{trans_forward.1} parent=43 // loop_body
                %v202 = vld [vmem:[%s200] sm:$0xff]
                %203 = vst [vmem:[%s201] sm:$0xff] %v202
                %v204 = vld [vmem:[%s200 + $0x8] sm:$0xff]
                %205 = vst [vmem:[%s201 + $0x20] sm:$0xff] %v204
              $region49: #{trans_forward.1} parent=43 // loop_footer
                %s199 = sadd.s32 1, %s195
              $region50: #{trans_forward.1} parent=43 // loop_footer_branch
                %194 = sbr.rel target = $region46
              $region51: #{trans_forward.1} parent=43 // loop_exit
                _
            $region44: #{trans_forward.1} parent=35 // pred_fallthru
              _
          $region36: #{trans_forward.1} parent=31 // pred_fallthru
            _
          %222 = vnop
        $region32: #{trans_forward.1} parent=23 // pred_fallthru
          _
      $region24: #{trans_forward.1} parent=5 // pred_fallthru
        _
      %p223 = scmp.le.s32.totalorder 2, %s10
      // Predicated region
      $region67: #{trans_forward.1} parent=5 // pred_check
        %p224 = pneg %p223
      $region68: #{trans_forward.1} parent=5 // pred_check_branch
        %226 = sbr.rel (%p224) target = $region70
      $region69: #{trans_forward.1} parent=5 // pred_region
        %s227 = ssub.s32 %s10, 2
        // Predicated region
        $region71: #{trans_forward.1} parent=69 // pred_check
          %p228 = pneg %p96
        $region72: #{trans_forward.1} parent=69 // pred_check_branch
          %230 = sbr.rel (%p228) target = $region74
        $region73: #{trans_forward.1} parent=69 // pred_region
          %s231 = sand.u32 %s81, 1
          %s232 = sand.u32 %s81, 1
          %s233 = smul.addr %s232, 16
          %s234 = scalar_lea.vmem [#allocation4], %s233
        $region74: #{trans_forward.1} parent=69 // pred_fallthru
          _
      $region70: #{trans_forward.1} parent=5 // pred_fallthru
        _
    $region6: #{trans_forward.1} parent=1 // loop_footer
      %s14 = sadd.s32 1, %s10
    $region7: #{trans_forward.1} parent=1 // loop_footer_branch
      %9 = sbr.rel target = $region3
    $region8: #{trans_forward.1} parent=1 // loop_exit
      _
    %235 = vsyncpa [#allocation3], 1
    %s236 = scalar_lea.sflag [#allocation3], 1
    %237 = vsyncpa %s236, 1

</llo_original>
